<compile_context>
chip_gen: v7x
topology: tpu7x:2x2x1
jax: 0.10.0
libtpu: 0.0.40
codegen_flags: <defaults>
</compile_context>

<pallas_src>
import jax
import jax.numpy as jnp
from jax.experimental import pallas as pl
from jax.experimental.pallas import tpu as pltpu

NC = 128  # lane-dense classifier/output width (real classes live in lanes [0:2])


def _round_up(x, m):
    return ((x + m - 1) // m) * m


def _mm_kernel(rows_ref, mfcc_ref, bw_ref, wa_ref, wpc_ref, wca_ref, bias_ref,
               out_ref):
    TB, H, K = rows_ref.shape           # (TB, H, 3*(W+2)*Cin + 1), bf16
    AH = wa_ref.shape[1]                # audio hidden (64)

    # --- image branch: Conv2d(3,16,3,pad=1) + bias as ONE bf16 GEMM.
    #     (bias folded in via the ones column appended as the last K entry)
    lhs = rows_ref[...].reshape(TB * H, K)          # layout-preserving (H % 8 == 0)
    acc = jnp.dot(lhs, bw_ref[...], preferred_element_type=jnp.float32)  # (TB*H, W*CO)
    acc = jnp.maximum(acc, 0.0)                     # ReLU

    # --- AdaptiveAvgPool(1,1) + image half of Linear(80,2) fused into one
    #     lane-dense matmul (mean folded into wpc), then a small sum over H.
    t = jnp.dot(acc.astype(jnp.bfloat16), wpc_ref[...],
                preferred_element_type=jnp.float32)              # (TB*H, NC)
    img_logits = jnp.sum(t.reshape(TB, H, t.shape[-1]), axis=1)  # (TB, NC)

    # --- audio branch: Linear(40,64) + ReLU (tiny; kept in f32)
    aud = jnp.dot(mfcc_ref[...], wa_ref[...], preferred_element_type=jnp.float32)
    aud = jnp.maximum(aud + bias_ref[0:1, :AH], 0.0)             # (TB, 64)
    aud_logits = jnp.dot(aud, wca_ref[...], preferred_element_type=jnp.float32)  # (TB, NC)

    # --- classifier bias + softmax over all 128 lanes.  Padded lanes carry a
    #     -1e30 bias so exp underflows to exactly 0 and never perturbs the sum.
    logits = img_logits + aud_logits + bias_ref[1:2, :]          # (TB, NC)
    m = jnp.max(logits, axis=1, keepdims=True)
    e = jnp.exp(logits - m)
    out_ref[...] = (e / jnp.sum(e, axis=1, keepdims=True)).astype(out_ref.dtype)


def multimodal_forward(img_nchw, mfcc, params, block_b=256):
    """img_nchw: (B, 3, H, W) f32 ; mfcc: (B, 40) f32 -> (B, 2) softmax probs."""
    B, Cin, H, W = img_nchw.shape
    CO = params["w_conv"].shape[-1]              # 16 conv output channels
    Hp, L = H + 2, (W + 2) * Cin                 # padded rows, channel-minor width
    N = W * CO                                   # conv-output columns per (b,h) row
    K = 3 * L + 1                                # fused conv K (+1 ones column for bias)
    AH = params["w_audio"].shape[1]              # 64
    A = mfcc.shape[1]                            # 40

    # ---- one-time parameter preprocessing (pure XLA, tiny) -------------------
    w_conv = params["w_conv"]                    # (3,3,Cin,CO) = (dy,dx,c,o)
    lI = jnp.arange(L)
    wI = jnp.arange(W)
    dxI = jnp.arange(3)
    cI = jnp.arange(Cin)
    sel = (lI[:, None, None, None]
           == Cin * (wI[None, :, None, None] + dxI[None, None, :, None])
           + cI[None, None, None, :]).astype(jnp.float32)        # (L, W, 3, Cin)
    # bw[dy, l, w*CO+o] = w_conv[dy, dx, c, o] where l = Cin*(w+dx)+c
    bw = jnp.einsum("lwxc,yxco->ylwo", sel, w_conv).reshape(3 * L, N)
    bias_row = jnp.tile(params["b_conv"], W)[None, :]            # (1, N)
    bw_full = jnp.concatenate([bw, bias_row], axis=0).astype(jnp.bfloat16)  # (K, N)

    w_cls = params["w_cls"]                      # (CO+AH, 2)
    wpc = jnp.zeros((N, NC), jnp.float32)
    wpc = wpc.at[:, :2].set(jnp.tile(w_cls[:CO, :], (W, 1)) / float(H * W))
    wpc = wpc.astype(jnp.bfloat16)               # fused pool + img half of cls
    wc_aud = jnp.zeros((AH, NC), jnp.float32).at[:, :2].set(w_cls[CO:, :])
    w_aud = params["w_audio"]                    # (40, AH)

    bias_pack = jnp.zeros((2, NC), jnp.float32)
    bias_pack = bias_pack.at[0, :AH].set(params["b_audio"])
    bias_pack = bias_pack.at[1, :].set(-1e30)    # kill padded classifier lanes
    bias_pack = bias_pack.at[1, :2].set(params["b_cls"])

    # ---- image layout: NCHW -> zero-padded channel-minor rows, 3 shifts
    #      lane-concatenated + ones column (conv bias), cast to bf16 -----------
    xpad = jnp.pad(img_nchw, ((0, 0), (0, 0), (1, 1), (1, 1)))   # (B,Cin,Hp,W+2)
    rows = jnp.transpose(xpad, (0, 2, 3, 1)).reshape(B, Hp, L)   # (B,Hp,L)
    rows_cat = jnp.concatenate(
        [rows[:, dy:dy + H, :] for dy in range(3)]
        + [jnp.ones((B, H, 1), rows.dtype)], axis=-1)            # (B,H,K)
    rows_cat = rows_cat.astype(jnp.bfloat16)

    # ---- batch blocking -------------------------------------------------------
    TB = block_b if B >= block_b else _round_up(B, 8)
    Bp = _round_up(B, TB)
    if Bp // TB < 2 and B > 8:
        # ensure >=2 grid steps so the "parallel" axis spans both v7x TensorCores
        TB = _round_up(-(-B // 2), 8)
        Bp = _round_up(B, TB)
    if Bp != B:
        rows_cat = jnp.pad(rows_cat, ((0, Bp - B), (0, 0), (0, 0)))
        mfcc_in = jnp.pad(mfcc, ((0, Bp - B), (0, 0)))
    else:
        mfcc_in = mfcc
    n_steps = Bp // TB

    flops = (2 * Bp * H * K * N + 2 * Bp * H * N * NC
             + 2 * Bp * A * AH + 2 * Bp * AH * NC)
    bytes_accessed = (Bp * H * K * 2 + Bp * A * 4 + Bp * NC * 4
                      + n_steps * (K * N * 2 + N * NC * 2 + A * AH * 4
                                   + AH * NC * 4 + 2 * NC * 4))

    out = pl.pallas_call(
        _mm_kernel,
        out_shape=jax.ShapeDtypeStruct((Bp, NC), jnp.float32),
        grid=(n_steps,),
        in_specs=[
            pl.BlockSpec((TB, H, K), lambda b: (b, 0, 0)),       # fused image rows (bf16)
            pl.BlockSpec((TB, A), lambda b: (b, 0)),             # mfcc block
            pl.BlockSpec((K, N), lambda b: (0, 0)),              # fused conv W + bias row
            pl.BlockSpec((A, AH), lambda b: (0, 0)),             # audio weight
            pl.BlockSpec((N, NC), lambda b: (0, 0)),             # pool+cls (img, lane-dense)
            pl.BlockSpec((AH, NC), lambda b: (0, 0)),            # cls (audio, lane-dense)
            pl.BlockSpec((2, NC), lambda b: (0, 0)),             # packed biases
        ],
        out_specs=pl.BlockSpec((TB, NC), lambda b: (b, 0)),
        compiler_params=pltpu.CompilerParams(
            dimension_semantics=("parallel",),
            vmem_limit_bytes=48 * 1024 * 1024),
        cost_estimate=pl.CostEstimate(
            flops=int(flops), transcendentals=int(Bp * NC),
            bytes_accessed=int(bytes_accessed)),
    )(rows_cat, mfcc_in, bw_full, w_aud, wpc, wc_aud, bias_pack)
    return out[:B, :2]


def init_params(key):
    ks = jax.random.split(key, 6)
    return {
        "w_conv": 0.1 * jax.random.normal(ks[0], (3, 3, 3, 16), jnp.float32),
        "b_conv": 0.1 * jax.random.normal(ks[1], (16,), jnp.float32),
        "w_audio": 0.1 * jax.random.normal(ks[2], (40, 64), jnp.float32),
        "b_audio": 0.1 * jax.random.normal(ks[3], (64,), jnp.float32),
        "w_cls": 0.1 * jax.random.normal(ks[4], (80, 2), jnp.float32),
        "b_cls": 0.1 * jax.random.normal(ks[5], (2,), jnp.float32),
    }


def _im2col_nhwc(img_nhwc):
    """(B, H, W, C) -> (B, H*W, 9*C) patches, 3x3 window, padding=1 (zeros)."""
    B, H, W, C = img_nhwc.shape
    pad = jnp.pad(img_nhwc, ((0, 0), (1, 1), (1, 1), (0, 0)))
    cols = []
    for dy in range(3):
        for dx in range(3):
            cols.append(pad[:, dy:dy + H, dx:dx + W, :])
    patches = jnp.stack(cols, axis=3)                            # (B, H, W, 9, C)
    return patches.reshape(B, H * W, 9 * C)


def _reference(img_nchw, mfcc, params):
    """Pure-JAX f32 reference of the exact PyTorch forward semantics."""
    img_nhwc = jnp.transpose(img_nchw, (0, 2, 3, 1))
    B, H, W, C = img_nhwc.shape
    patches = _im2col_nhwc(img_nhwc)
    conv = patches @ params["w_conv"].reshape(9 * C, 16) + params["b_conv"]
    conv = jnp.maximum(conv, 0.0)
    img_feat = jnp.mean(conv, axis=1)                            # (B, 16)
    aud = jnp.maximum(mfcc @ params["w_audio"] + params["b_audio"], 0.0)
    combined = jnp.concatenate([img_feat, aud], axis=1)          # (B, 80)
    logits = combined @ params["w_cls"] + params["b_cls"]
    return jax.nn.softmax(logits, axis=1)


if __name__ == "__main__":
    key = jax.random.PRNGKey(0)
    k_img, k_mfcc, k_par = jax.random.split(key, 3)

    B, Cin, H, W = 2, 3, 16, 16
    img = jax.random.normal(k_img, (B, Cin, H, W), jnp.float32)
    mfcc = jax.random.normal(k_mfcc, (B, 40), jnp.float32)
    params = init_params(k_par)

    out = multimodal_forward(img, mfcc, params)
    out = jax.block_until_ready(out)

    ref = _reference(img, mfcc, params)
    assert out.shape == (B, 2)
    assert jnp.allclose(jnp.sum(out, axis=1), 1.0, atol=1e-5)
    # bf16 image/conv/pool path -> relaxed tolerance vs. the f32 reference.
    assert jnp.allclose(out, ref, atol=1e-2, rtol=1e-2)

    print("KERNEL_OK")
</pallas_src>

<mosaic_0001>
module attributes {stable_mosaic.version = 11 : i64} {
  func.func @_mm_kernel(%arg0: i32, %arg1: memref<8x16x163xbf16, #tpu.memory_space<vmem>>, %arg2: memref<8x40xf32, #tpu.memory_space<vmem>>, %arg3: memref<163x256xbf16, #tpu.memory_space<vmem>>, %arg4: memref<40x64xf32, #tpu.memory_space<vmem>>, %arg5: memref<256x128xbf16, #tpu.memory_space<vmem>>, %arg6: memref<64x128xf32, #tpu.memory_space<vmem>>, %arg7: memref<2x128xf32, #tpu.memory_space<vmem>>, %arg8: memref<8x128xf32, #tpu.memory_space<vmem>>) attributes {dimension_semantics = [#tpu.dimension_semantics<parallel>], iteration_bounds = array<i64: 1>, scalar_prefetch = 0 : i64, scratch_operands = 0 : i64, tpu.core_type = #tpu.core_type<tc>, window_params = [{transform_indices = @transform_0, window_bounds = array<i64: 8, 16, 163>}, {transform_indices = @transform_1, window_bounds = array<i64: 8, 40>}, {pipeline_mode = #tpu.pipeline_mode<synchronous>, transform_indices = @transform_2, window_bounds = array<i64: 163, 256>}, {pipeline_mode = #tpu.pipeline_mode<synchronous>, transform_indices = @transform_3, window_bounds = array<i64: 40, 64>}, {pipeline_mode = #tpu.pipeline_mode<synchronous>, transform_indices = @transform_4, window_bounds = array<i64: 256, 128>}, {pipeline_mode = #tpu.pipeline_mode<synchronous>, transform_indices = @transform_5, window_bounds = array<i64: 64, 128>}, {pipeline_mode = #tpu.pipeline_mode<synchronous>, transform_indices = @transform_6, window_bounds = array<i64: 2, 128>}, {transform_indices = @transform_7, window_bounds = array<i64: 8, 128>}]} {
    %c0 = arith.constant 0 : index
    %c0_0 = arith.constant 0 : index
    %c0_1 = arith.constant 0 : index
    %0 = vector.load %arg1[%c0, %c0_0, %c0_1] : memref<8x16x163xbf16, #tpu.memory_space<vmem>>, vector<8x16x163xbf16>
    %1 = vector.shape_cast %0 : vector<8x16x163xbf16> to vector<128x163xbf16>
    %c0_2 = arith.constant 0 : index
    %c0_3 = arith.constant 0 : index
    %2 = vector.load %arg3[%c0_2, %c0_3] : memref<163x256xbf16, #tpu.memory_space<vmem>>, vector<163x256xbf16>
    %cst = arith.constant dense<0.000000e+00> : vector<128x256xf32>
    %3 = tpu.matmul %1, %2, %cst {dimension_numbers = #tpu.dot_dimension_numbers<[1], [0], [0], [1], [0, 0, 1, 1], [], []>} : vector<128x163xbf16>, vector<163x256xbf16>, vector<128x256xf32> -> vector<128x256xf32>
    %cst_4 = arith.constant 0.000000e+00 : f32
    %4 = vector.broadcast %cst_4 : f32 to vector<128x256xf32>
    %5 = arith.maximumf %3, %4 : vector<128x256xf32>
    %6 = arith.truncf %5 : vector<128x256xf32> to vector<128x256xbf16>
    %c0_5 = arith.constant 0 : index
    %c0_6 = arith.constant 0 : index
    %7 = vector.load %arg5[%c0_5, %c0_6] : memref<256x128xbf16, #tpu.memory_space<vmem>>, vector<256x128xbf16>
    %cst_7 = arith.constant dense<0.000000e+00> : vector<128x128xf32>
    %8 = tpu.matmul %6, %7, %cst_7 {dimension_numbers = #tpu.dot_dimension_numbers<[1], [0], [0], [1], [0, 0, 1, 1], [], []>} : vector<128x256xbf16>, vector<256x128xbf16>, vector<128x128xf32> -> vector<128x128xf32>
    %9 = vector.shape_cast %8 : vector<128x128xf32> to vector<8x16x128xf32>
    %cst_8 = arith.constant dense<0.000000e+00> : vector<8x128xf32>
    %10 = vector.multi_reduction <add>, %9, %cst_8 [1] : vector<8x16x128xf32> to vector<8x128xf32>
    %c0_9 = arith.constant 0 : index
    %c0_10 = arith.constant 0 : index
    %11 = vector.load %arg2[%c0_9, %c0_10] : memref<8x40xf32, #tpu.memory_space<vmem>>, vector<8x40xf32>
    %c0_11 = arith.constant 0 : index
    %c0_12 = arith.constant 0 : index
    %12 = vector.load %arg4[%c0_11, %c0_12] : memref<40x64xf32, #tpu.memory_space<vmem>>, vector<40x64xf32>
    %cst_13 = arith.constant dense<0.000000e+00> : vector<8x64xf32>
    %13 = tpu.matmul %11, %12, %cst_13 {dimension_numbers = #tpu.dot_dimension_numbers<[1], [0], [0], [1], [0, 0, 1, 1], [], []>} : vector<8x40xf32>, vector<40x64xf32>, vector<8x64xf32> -> vector<8x64xf32>
    %c0_14 = arith.constant 0 : index
    %c0_15 = arith.constant 0 : index
    %14 = vector.load %arg7[%c0_14, %c0_15] : memref<2x128xf32, #tpu.memory_space<vmem>>, vector<1x64xf32>
    %15 = vector.broadcast %14 : vector<1x64xf32> to vector<8x64xf32>
    %16 = arith.addf %13, %15 : vector<8x64xf32>
    %cst_16 = arith.constant 0.000000e+00 : f32
    %17 = vector.broadcast %cst_16 : f32 to vector<8x64xf32>
    %18 = arith.maximumf %16, %17 : vector<8x64xf32>
    %c0_17 = arith.constant 0 : index
    %c0_18 = arith.constant 0 : index
    %19 = vector.load %arg6[%c0_17, %c0_18] : memref<64x128xf32, #tpu.memory_space<vmem>>, vector<64x128xf32>
    %cst_19 = arith.constant dense<0.000000e+00> : vector<8x128xf32>
    %20 = tpu.matmul %18, %19, %cst_19 {dimension_numbers = #tpu.dot_dimension_numbers<[1], [0], [0], [1], [0, 0, 1, 1], [], []>} : vector<8x64xf32>, vector<64x128xf32>, vector<8x128xf32> -> vector<8x128xf32>
    %21 = arith.addf %10, %20 : vector<8x128xf32>
    %c1 = arith.constant 1 : index
    %c0_20 = arith.constant 0 : index
    %22 = vector.load %arg7[%c1, %c0_20] : memref<2x128xf32, #tpu.memory_space<vmem>>, vector<1x128xf32>
    %23 = vector.broadcast %22 : vector<1x128xf32> to vector<8x128xf32>
    %24 = arith.addf %21, %23 : vector<8x128xf32>
    %cst_21 = arith.constant dense<0xFF800000> : vector<8xf32>
    %25 = vector.multi_reduction <maximumf>, %24, %cst_21 [1] : vector<8x128xf32> to vector<8xf32>
    %26 = vector.shape_cast %25 : vector<8xf32> to vector<8x1xf32>
    %27 = vector.broadcast %26 : vector<8x1xf32> to vector<8x128xf32>
    %28 = arith.subf %24, %27 : vector<8x128xf32>
    %29 = math.exp %28 : vector<8x128xf32>
    %cst_22 = arith.constant dense<0.000000e+00> : vector<8xf32>
    %30 = vector.multi_reduction <add>, %29, %cst_22 [1] : vector<8x128xf32> to vector<8xf32>
    %31 = vector.shape_cast %30 : vector<8xf32> to vector<8x1xf32>
    %32 = vector.broadcast %31 : vector<8x1xf32> to vector<8x128xf32>
    %33 = arith.divf %29, %32 : vector<8x128xf32>
    %c0_23 = arith.constant 0 : index
    %c0_24 = arith.constant 0 : index
    %34 = vector.load %arg8[%c0_23, %c0_24] : memref<8x128xf32, #tpu.memory_space<vmem>>, vector<8x128xf32>
    tpu.vector_store %arg8[%c0_23, %c0_24], %33 {strides = array<i32>} : memref<8x128xf32, #tpu.memory_space<vmem>>, vector<8x128xf32>,
    return
  }
  func.func @transform_0(%arg0: i32) -> (i32, i32, i32) {
    %c0_i32 = arith.constant 0 : i32
    %c0_i32_0 = arith.constant 0 : i32
    %c0_i32_1 = arith.constant 0 : i32
    return %arg0, %c0_i32, %c0_i32_0 : i32, i32, i32
  }
  func.func @transform_1(%arg0: i32) -> (i32, i32) {
    %c0_i32 = arith.constant 0 : i32
    %c0_i32_0 = arith.constant 0 : i32
    return %arg0, %c0_i32 : i32, i32
  }
  func.func @transform_2(%arg0: i32) -> (i32, i32) {
    %c0_i32 = arith.constant 0 : i32
    %c0_i32_0 = arith.constant 0 : i32
    %c0_i32_1 = arith.constant 0 : i32
    return %c0_i32, %c0_i32_0 : i32, i32
  }
  func.func @transform_3(%arg0: i32) -> (i32, i32) {
    %c0_i32 = arith.constant 0 : i32
    %c0_i32_0 = arith.constant 0 : i32
    %c0_i32_1 = arith.constant 0 : i32
    return %c0_i32, %c0_i32_0 : i32, i32
  }
  func.func @transform_4(%arg0: i32) -> (i32, i32) {
    %c0_i32 = arith.constant 0 : i32
    %c0_i32_0 = arith.constant 0 : i32
    %c0_i32_1 = arith.constant 0 : i32
    return %c0_i32, %c0_i32_0 : i32, i32
  }
  func.func @transform_5(%arg0: i32) -> (i32, i32) {
    %c0_i32 = arith.constant 0 : i32
    %c0_i32_0 = arith.constant 0 : i32
    %c0_i32_1 = arith.constant 0 : i32
    return %c0_i32, %c0_i32_0 : i32, i32
  }
  func.func @transform_6(%arg0: i32) -> (i32, i32) {
    %c0_i32 = arith.constant 0 : i32
    %c0_i32_0 = arith.constant 0 : i32
    %c0_i32_1 = arith.constant 0 : i32
    return %c0_i32, %c0_i32_0 : i32, i32
  }
  func.func @transform_7(%arg0: i32) -> (i32, i32) {
    %c0_i32 = arith.constant 0 : i32
    %c0_i32_0 = arith.constant 0 : i32
    return %arg0, %c0_i32 : i32, i32
  }
}

</mosaic_0001>

<llo_original>
// kernel: tpu_custom_call.1
$region0: #{tpu_custom_call.1}
  #allocation0 [shape = 'u32[]', space=smem, size = 0x4, offset = 0x4, fixed_abs, tag = 'smem constant byte address 0x4 - core index']
  #allocation1 [shape = 'u32[144,128]{1,0:T(1,128)}', space=vmem, size = 0x12000, scoped, tag = 'internal scratch']
  %s0 = inlined_call_operand.hbm [shape: bf16[8,16,163], index: 0, kind: input, shape index: {}]
  %s1 = inlined_call_operand.hbm [shape: f32[8,40], index: 1, kind: input, shape index: {}]
  %s2 = inlined_call_operand.hbm [shape: bf16[163,256], index: 2, kind: input, shape index: {}]
  %s3 = inlined_call_operand.hbm [shape: f32[40,64], index: 3, kind: input, shape index: {}]
  %s4 = inlined_call_operand.hbm [shape: bf16[256,128], index: 4, kind: input, shape index: {}]
  %s5 = inlined_call_operand.hbm [shape: f32[64,128], index: 5, kind: input, shape index: {}]
  %s6 = inlined_call_operand.vmem [shape: f32[2,128], index: 6, kind: input, shape index: {}]
  %s7 = inlined_call_operand.hbm [shape: f32[8,128], index: 7, kind: output, shape index: {}]
  %s8 = sld [smem:[#allocation0]]
  $region62: #{tpu_custom_call.1} parent=0
    _
  %s10 = ssub.s32 1, %s8
  %s11 = scalar_select 0, %s10, %s8
  $region1: #{tpu_custom_call.1} parent=0
    #allocation2 [shape = 'u8[65536]{0}', space=vmem, size = 0x10000, scoped, tag = 'input window, operand 0, single buffered']
    #allocation3 [shape = 's32[1]{0}', space=sflag, size = 0x4, scoped, tag = 'scoped memory for tpu_custom_call.1']
    #allocation4 [shape = 's32[1]{0}', space=sflag, size = 0x4, scoped, tag = 'scoped memory for tpu_custom_call.1']
    #allocation5 [shape = 'u8[4096]{0}', space=vmem, size = 0x1000, scoped, tag = 'input window, operand 1, single buffered']
    #allocation6 [shape = 's32[1]{0}', space=sflag, size = 0x4, scoped, tag = 'scoped memory for tpu_custom_call.1']
    #allocation7 [shape = 'u8[86016]{0}', space=vmem, size = 0x15000, scoped, tag = 'input window, operand 2, single buffered']
    #allocation8 [shape = 'u8[20480]{0}', space=vmem, size = 0x5000, scoped, tag = 'input window, operand 3, single buffered']
    #allocation9 [shape = 's32[1]{0}', space=sflag, size = 0x4, scoped, tag = 'scoped memory for tpu_custom_call.1']
    #allocation10 [shape = 'u8[65536]{0}', space=vmem, size = 0x10000, scoped, tag = 'input window, operand 4, single buffered']
    #allocation11 [shape = 'u8[32768]{0}', space=vmem, size = 0x8000, scoped, tag = 'input window, operand 5, single buffered']
    #allocation12 [shape = 's32[1]{0}', space=sflag, size = 0x4, scoped, tag = 'scoped memory for tpu_custom_call.1']
    #allocation13 [shape = 'u8[4096]{0}', space=vmem, size = 0x1000, scoped, tag = 'output window, operand 0, single buffered']
    %12 = vsyncpa [#allocation3], 0
    %13 = vsyncpa [#allocation6], 0
    %14 = vsyncpa [#allocation9], 0
    %15 = vsyncpa [#allocation12], 0
    %16 = vsyncpa [#allocation4], 0
    // Predicated region
    $region2: #{tpu_custom_call.1} parent=1 // pred_check
      _
    $region3: #{tpu_custom_call.1} parent=1 // pred_check_branch
      %18 = sbr.rel (0) target = $region5
    $region4: #{tpu_custom_call.1} parent=1 // pred_region
      %s20 = ssub.s32 2048, 2048
      %21 = vsyncadd [#allocation3], %s20
      %s22 = sshll.u32 [#allocation2], 4
      %s23 = int_to_ptr.vmem [resolvable:$true] %s22
      %28 = dma.hbm_to_vmem [thread:$0]  %s0, 2048, %s23, [#allocation3], 128, 128, 8
    $region5: #{tpu_custom_call.1} parent=1 // pred_fallthru
      _
    // Predicated region
    $region6: #{tpu_custom_call.1} parent=1 // pred_check
      _
    $region7: #{tpu_custom_call.1} parent=1 // pred_check_branch
      %30 = sbr.rel (0) target = $region9
    $region8: #{tpu_custom_call.1} parent=1 // pred_region
      %s32 = ssub.s32 128, 128
      %33 = vsyncadd [#allocation6], %s32
      %s35 = sshll.u32 [#allocation5], 4
      %s36 = int_to_ptr.vmem [resolvable:$true] %s35
      %38 = dma.hbm_to_vmem [thread:$0]  %s1, 128, %s36, [#allocation6]
    $region9: #{tpu_custom_call.1} parent=1 // pred_fallthru
      _
    // Predicated region
    $region10: #{tpu_custom_call.1} parent=1 // pred_check
      _
    $region11: #{tpu_custom_call.1} parent=1 // pred_check_branch
      %40 = sbr.rel (0) target = $region13
    $region12: #{tpu_custom_call.1} parent=1 // pred_region
      %s42 = ssub.s32 2688, 2688
      %43 = vsyncadd [#allocation6], %s42
      %s44 = sshll.u32 [#allocation7], 4
      %s45 = int_to_ptr.vmem [resolvable:$true] %s44
      %50 = dma.hbm_to_vmem [thread:$0]  %s2, 2688, %s45, [#allocation6], 128, 128, 8
    $region13: #{tpu_custom_call.1} parent=1 // pred_fallthru
      _
    // Predicated region
    $region14: #{tpu_custom_call.1} parent=1 // pred_check
      _
    $region15: #{tpu_custom_call.1} parent=1 // pred_check_branch
      %52 = sbr.rel (0) target = $region17
    $region16: #{tpu_custom_call.1} parent=1 // pred_region
      %s54 = ssub.s32 640, 640
      %55 = vsyncadd [#allocation9], %s54
      %s56 = sshll.u32 [#allocation8], 4
      %s57 = int_to_ptr.vmem [resolvable:$true] %s56
      %62 = dma.hbm_to_vmem [thread:$0]  %s3, 640, %s57, [#allocation9], 128, 128, 8
    $region17: #{tpu_custom_call.1} parent=1 // pred_fallthru
      _
    // Predicated region
    $region18: #{tpu_custom_call.1} parent=1 // pred_check
      _
    $region19: #{tpu_custom_call.1} parent=1 // pred_check_branch
      %64 = sbr.rel (0) target = $region21
    $region20: #{tpu_custom_call.1} parent=1 // pred_region
      %s66 = ssub.s32 2048, 2048
      %67 = vsyncadd [#allocation9], %s66
      %s68 = sshll.u32 [#allocation10], 4
      %s69 = int_to_ptr.vmem [resolvable:$true] %s68
      %74 = dma.hbm_to_vmem [thread:$0]  %s4, 2048, %s69, [#allocation9], 64, 64, 4
    $region21: #{tpu_custom_call.1} parent=1 // pred_fallthru
      _
    // Predicated region
    $region22: #{tpu_custom_call.1} parent=1 // pred_check
      _
    $region23: #{tpu_custom_call.1} parent=1 // pred_check_branch
      %76 = sbr.rel (0) target = $region25
    $region24: #{tpu_custom_call.1} parent=1 // pred_region
      %s78 = ssub.s32 1024, 1024
      %79 = vsyncadd [#allocation12], %s78
      %s80 = sshll.u32 [#allocation11], 4
      %s81 = int_to_ptr.vmem [resolvable:$true] %s80
      %86 = dma.hbm_to_vmem [thread:$0]  %s5, 1024, %s81, [#allocation12], 128, 128, 8
    $region25: #{tpu_custom_call.1} parent=1 // pred_fallthru
      _
    // Predicated region
    $region26: #{tpu_custom_call.1} parent=1 // pred_check
      _
    $region27: #{tpu_custom_call.1} parent=1 // pred_check_branch
      %88 = sbr.rel (0) target = $region29
    $region28: #{tpu_custom_call.1} parent=1 // pred_region
      _
    $region29: #{tpu_custom_call.1} parent=1 // pred_fallthru
      _
    // Predicated region
    $region30: #{tpu_custom_call.1} parent=1 // pred_check
      _
    $region31: #{tpu_custom_call.1} parent=1 // pred_check_branch
      %90 = sbr.rel (0) target = $region33
    $region32: #{tpu_custom_call.1} parent=1 // pred_region
      %91 = dma.done [#allocation3], 2048
    $region33: #{tpu_custom_call.1} parent=1 // pred_fallthru
      _
    // Predicated region
    $region34: #{tpu_custom_call.1} parent=1 // pred_check
      _
    $region35: #{tpu_custom_call.1} parent=1 // pred_check_branch
      %93 = sbr.rel (0) target = $region37
    $region36: #{tpu_custom_call.1} parent=1 // pred_region
      %94 = dma.done [#allocation6], 128
    $region37: #{tpu_custom_call.1} parent=1 // pred_fallthru
      _
    // Predicated region
    $region38: #{tpu_custom_call.1} parent=1 // pred_check
      _
    $region39: #{tpu_custom_call.1} parent=1 // pred_check_branch
      %96 = sbr.rel (0) target = $region41
    $region40: #{tpu_custom_call.1} parent=1 // pred_region
      %97 = dma.done [#allocation6], 2688
    $region41: #{tpu_custom_call.1} parent=1 // pred_fallthru
      _
    // Predicated region
    $region42: #{tpu_custom_call.1} parent=1 // pred_check
      _
    $region43: #{tpu_custom_call.1} parent=1 // pred_check_branch
      %99 = sbr.rel (0) target = $region45
    $region44: #{tpu_custom_call.1} parent=1 // pred_region
      %100 = dma.done [#allocation9], 640
    $region45: #{tpu_custom_call.1} parent=1 // pred_fallthru
      _
    // Predicated region
    $region46: #{tpu_custom_call.1} parent=1 // pred_check
      _
    $region47: #{tpu_custom_call.1} parent=1 // pred_check_branch
      %102 = sbr.rel (0) target = $region49
    $region48: #{tpu_custom_call.1} parent=1 // pred_region
      %103 = dma.done [#allocation9], 2048
    $region49: #{tpu_custom_call.1} parent=1 // pred_fallthru
      _
    // Predicated region
    $region50: #{tpu_custom_call.1} parent=1 // pred_check
      _
    $region51: #{tpu_custom_call.1} parent=1 // pred_check_branch
      %105 = sbr.rel (0) target = $region53
    $region52: #{tpu_custom_call.1} parent=1 // pred_region
      %106 = dma.done [#allocation12], 1024
    $region53: #{tpu_custom_call.1} parent=1 // pred_fallthru
      _
    %v108 = vld [vmem:[#allocation2] sm:$0xff]
    %v109 = vld [vmem:[#allocation2 + $0x8] sm:$0xff]
    %v110 = vld [vmem:[#allocation2 + $0x10] sm:$0xff]
    %v111 = vld [vmem:[#allocation2 + $0x18] sm:$0xff]
    %v112 = vld [vmem:[#allocation2 + $0x20] sm:$0xff]
    %v113 = vld [vmem:[#allocation2 + $0x28] sm:$0xff]
    %v114 = vld [vmem:[#allocation2 + $0x30] sm:$0xff]
    %v115 = vld [vmem:[#allocation2 + $0x38] sm:$0xff]
    %v116 = vld [vmem:[#allocation2 + $0x40] sm:$0xff]
    %v117 = vld [vmem:[#allocation2 + $0x48] sm:$0xff]
    %v118 = vld [vmem:[#allocation2 + $0x50] sm:$0xff]
    %v119 = vld [vmem:[#allocation2 + $0x58] sm:$0xff]
    %v120 = vld [vmem:[#allocation2 + $0x60] sm:$0xff]
    %v121 = vld [vmem:[#allocation2 + $0x68] sm:$0xff]
    %v122 = vld [vmem:[#allocation2 + $0x70] sm:$0xff]
    %v123 = vld [vmem:[#allocation2 + $0x78] sm:$0xff]
    %v124 = vld [vmem:[#allocation7] sm:$0xff]
    %v125 = vld [vmem:[#allocation7 + $0x8] sm:$0xff]
    %v126 = vld [vmem:[#allocation7 + $0x10] sm:$0xff]
    %v127 = vld [vmem:[#allocation7 + $0x18] sm:$0xff]
    %v128 = vld [vmem:[#allocation7 + $0x20] sm:$0xff]
    %v129 = vld [vmem:[#allocation7 + $0x28] sm:$0xff]
    %v130 = vld [vmem:[#allocation7 + $0x30] sm:$0xff]
    %v131 = vld [vmem:[#allocation7 + $0x38] sm:$0xff]
    %v132 = vld [vmem:[#allocation7 + $0x40] sm:$0xff]
    %v133 = vld [vmem:[#allocation7 + $0x48] sm:$0xff]
    %v134 = vld [vmem:[#allocation7 + $0x50] sm:$0xff]
    %v135 = vld [vmem:[#allocation7 + $0x58] sm:$0xff]
    %v136 = vld [vmem:[#allocation7 + $0x60] sm:$0xff]
    %v137 = vld [vmem:[#allocation7 + $0x68] sm:$0xff]
    %v138 = vld [vmem:[#allocation7 + $0x70] sm:$0xff]
    %v139 = vld [vmem:[#allocation7 + $0x78] sm:$0xff]
    %v140 = vld [vmem:[#allocation7 + $0x80] sm:$0xff]
    %v141 = vld [vmem:[#allocation7 + $0x88] sm:$0xff]
    %v142 = vld [vmem:[#allocation7 + $0x90] sm:$0xff]
    %v143 = vld [vmem:[#allocation7 + $0x98] sm:$0xff]
    %v144 = vld [vmem:[#allocation7 + $0xa0] sm:$0x33]
    %v161 = vunpack.c.l.b16 %v108
    %v162 = vunpack.c.h.b16 %v108
    %v163 = vunpack.c.l.b16 %v109
    %v164 = vunpack.c.h.b16 %v109
    %v165 = vunpack.c.l.b16 %v110
    %v166 = vunpack.c.h.b16 %v110
    %v167 = vunpack.c.l.b16 %v111
    %v168 = vunpack.c.h.b16 %v111
    %v169 = vunpack.c.l.b16 %v112
    %v170 = vunpack.c.h.b16 %v112
    %v171 = vunpack.c.l.b16 %v113
    %v172 = vunpack.c.h.b16 %v113
    %v173 = vunpack.c.l.b16 %v114
    %v174 = vunpack.c.h.b16 %v114
    %v175 = vunpack.c.l.b16 %v115
    %v176 = vunpack.c.h.b16 %v115
    %v177 = vunpack.c.l.b16 %v116
    %v178 = vunpack.c.h.b16 %v116
    %v179 = vunpack.c.l.b16 %v117
    %v180 = vunpack.c.h.b16 %v117
    %v181 = vunpack.c.l.b16 %v118
    %v182 = vunpack.c.h.b16 %v118
    %v183 = vunpack.c.l.b16 %v119
    %v184 = vunpack.c.h.b16 %v119
    %v185 = vunpack.c.l.b16 %v120
    %v186 = vunpack.c.h.b16 %v120
    %v187 = vunpack.c.l.b16 %v121
    %v188 = vunpack.c.h.b16 %v121
    %v189 = vunpack.c.l.b16 %v122
    %v190 = vunpack.c.h.b16 %v122
    %v191 = vunpack.c.l.b16 %v123
    %v192 = vunpack.c.h.b16 %v123
    %v193 = vpack.c.b16 %v163, %v161
    %v194 = vpack.c.b16 %v164, %v162
    %v195 = vpack.c.b16 %v167, %v165
    %v196 = vpack.c.b16 %v168, %v166
    %v197 = vpack.c.b16 %v171, %v169
    %v198 = vpack.c.b16 %v172, %v170
    %v199 = vpack.c.b16 %v175, %v173
    %v200 = vpack.c.b16 %v176, %v174
    %v201 = vpack.c.b16 %v179, %v177
    %v202 = vpack.c.b16 %v180, %v178
    %v203 = vpack.c.b16 %v183, %v181
    %v204 = vpack.c.b16 %v184, %v182
    %v205 = vpack.c.b16 %v187, %v185
    %v206 = vpack.c.b16 %v188, %v186
    %v207 = vpack.c.b16 %v191, %v189
    %v208 = vpack.c.b16 %v192, %v190
    %v238 = vunpack.c.l.b16 %v124
    %v239 = vunpack.c.h.b16 %v124
    %v240 = vunpack.c.l.b16 %v125
    %v241 = vunpack.c.h.b16 %v125
    %v242 = vunpack.c.l.b16 %v126
    %v243 = vunpack.c.h.b16 %v126
    %v244 = vunpack.c.l.b16 %v127
    %v245 = vunpack.c.h.b16 %v127
    %v246 = vunpack.c.l.b16 %v128
    %v247 = vunpack.c.h.b16 %v128
    %v248 = vunpack.c.l.b16 %v129
    %v249 = vunpack.c.h.b16 %v129
    %v250 = vunpack.c.l.b16 %v130
    %v251 = vunpack.c.h.b16 %v130
    %v252 = vunpack.c.l.b16 %v131
    %v253 = vunpack.c.h.b16 %v131
    %v254 = vunpack.c.l.b16 %v132
    %v255 = vunpack.c.h.b16 %v132
    %v256 = vunpack.c.l.b16 %v133
    %v257 = vunpack.c.h.b16 %v133
    %v258 = vunpack.c.l.b16 %v134
    %v259 = vunpack.c.h.b16 %v134
    %v260 = vunpack.c.l.b16 %v135
    %v261 = vunpack.c.h.b16 %v135
    %v262 = vunpack.c.l.b16 %v136
    %v263 = vunpack.c.h.b16 %v136
    %v264 = vunpack.c.l.b16 %v137
    %v265 = vunpack.c.h.b16 %v137
    %v266 = vunpack.c.l.b16 %v138
    %v267 = vunpack.c.h.b16 %v138
    %v268 = vunpack.c.l.b16 %v139
    %v269 = vunpack.c.h.b16 %v139
    %v270 = vunpack.c.l.b16 %v140
    %v271 = vunpack.c.h.b16 %v140
    %v272 = vunpack.c.l.b16 %v141
    %v273 = vunpack.c.h.b16 %v141
    %v274 = vunpack.c.l.b16 %v142
    %v275 = vunpack.c.h.b16 %v142
    %v276 = vunpack.c.l.b16 %v143
    %v277 = vunpack.c.h.b16 %v143
    %v278 = vunpack.c.l.b16 %v144
    %v279 = vunpack.c.h.b16 %v144
    %v280 = vpack.c.b16 %v240, %v238
    %v281 = vpack.c.b16 %v241, %v239
    %v282 = vpack.c.b16 %v244, %v242
    %v283 = vpack.c.b16 %v245, %v243
    %v284 = vpack.c.b16 %v248, %v246
    %v285 = vpack.c.b16 %v249, %v247
    %v286 = vpack.c.b16 %v252, %v250
    %v287 = vpack.c.b16 %v253, %v251
    %v288 = vpack.c.b16 %v256, %v254
    %v289 = vpack.c.b16 %v257, %v255
    %v290 = vpack.c.b16 %v260, %v258
    %v291 = vpack.c.b16 %v261, %v259
    %v292 = vpack.c.b16 %v264, %v262
    %v293 = vpack.c.b16 %v265, %v263
    %v294 = vpack.c.b16 %v268, %v266
    %v295 = vpack.c.b16 %v269, %v267
    %v296 = vpack.c.b16 %v272, %v270
    %v297 = vpack.c.b16 %v273, %v271
    %v298 = vpack.c.b16 %v276, %v274
    %v299 = vpack.c.b16 %v277, %v275
    %v300 = vpack.c.b16 %v278, %v278
    %v301 = vpack.c.b16 %v279, %v279
    %vm322 = vcmask 285696
    %v324 = vsel %vm322, %v194, 0
    %v327 = vsel %vm322, %v196, 0
    %v330 = vsel %vm322, %v198, 0
    %v333 = vsel %vm322, %v200, 0
    %v336 = vsel %vm322, %v202, 0
    %v339 = vsel %vm322, %v204, 0
    %v342 = vsel %vm322, %v206, 0
    %v345 = vsel %vm322, %v208, 0
    %vm347 = vcmask 1040384
    %vm348 = vcmask 1041408
    %v349 = vsel %vm347, 4294967295, 65535
    %v350 = vsel %vm348, %v349, 0
    %v352 = vand.u32 %v300, %v350
    %v355 = vand.u32 %v301, %v350
    %357 = vmatprep.subr.bf16.mxu0 %v281
    %358 = vmatpush1.bf16.msra.mxu0 %v280
    %359 = vmatprep.subr.bf16.mxu0 %v283
    %360 = vmatpush1.bf16.msra.mxu0 %v282
    %361 = vmatprep.subr.bf16.mxu0 %v285
    %362 = vmatpush1.bf16.msra.mxu0 %v284
    %363 = vmatprep.subr.bf16.mxu0 %v287
    %364 = vmatpush1.bf16.msra.mxu0 %v286
    %365 = vmatprep.subr.bf16.mxu0 %v289
    %366 = vmatpush1.bf16.msra.mxu0 %v288
    %367 = vmatprep.subr.bf16.mxu0 %v291
    %368 = vmatpush1.bf16.msra.mxu0 %v290
    %369 = vmatprep.subr.bf16.mxu0 %v293
    %370 = vmatpush1.bf16.msra.mxu0 %v292
    %371 = vmatprep.subr.bf16.mxu0 %v295
    %372 = vmatpush1.bf16.msra.mxu0 %v294
    %373 = vmatprep.subr.bf16.mxu0 %v297
    %374 = vmatpush1.bf16.msra.mxu0 %v296
    %375 = vmatprep.subr.bf16.mxu0 %v299
    %376 = vmatpush1.bf16.msra.mxu0 %v298
    %377 = vmatprep.subr.bf16.mxu0 %v355
    %378 = vmatpush1.bf16.msra.mxu0 %v352
    %379 = vmatprep.subr.bf16.mxu0 0
    %380 = vmatpush1.bf16.msra.mxu0 0
    %381 = vmatprep.subr.bf16.mxu0 0
    %382 = vmatpush1.bf16.msra.mxu0 0
    %383 = vmatprep.subr.bf16.mxu0 0
    %384 = vmatpush1.bf16.msra.mxu0 0
    %385 = vmatprep.subr.bf16.mxu0 0
    %386 = vmatpush1.bf16.msra.mxu0 0
    %387 = vmatprep.subr.bf16.mxu0 0
    %388 = vmatpush1.bf16.msra.mxu0 0
    %389 = vmatprep.mubr.bf16.mxu0 %v324
    %390 = vmatmul.mubr.bf16.gmra.mrb[0].mxu0 %v193
    %v391 = vpop.f32.mrb[0].mxu0
    %v392 = vadd.f32 0.0, %v391
    %v393 = vpop.f32.mrb[0].mxu0
    %v394 = vadd.f32 0.0, %v393
    %v395 = vpop.f32.mrb[0].mxu0
    %v396 = vadd.f32 0.0, %v395
    %v397 = vpop.f32.mrb[0].mxu0
    %v398 = vadd.f32 0.0, %v397
    %399 = vmatprep.mubr.bf16.mxu0 %v327
    %400 = vmatmul.mubr.bf16.gmra.mrb[0].mxu0 %v195
    %v401 = vpop.f32.mrb[0].mxu0
    %v402 = vadd.f32 0.0, %v401
    %v403 = vpop.f32.mrb[0].mxu0
    %v404 = vadd.f32 0.0, %v403
    %v405 = vpop.f32.mrb[0].mxu0
    %v406 = vadd.f32 0.0, %v405
    %v407 = vpop.f32.mrb[0].mxu0
    %v408 = vadd.f32 0.0, %v407
    %409 = vmatprep.mubr.bf16.mxu0 %v330
    %410 = vmatmul.mubr.bf16.gmra.mrb[0].mxu0 %v197
    %v411 = vpop.f32.mrb[0].mxu0
    %v412 = vadd.f32 0.0, %v411
    %v413 = vpop.f32.mrb[0].mxu0
    %v414 = vadd.f32 0.0, %v413
    %v415 = vpop.f32.mrb[0].mxu0
    %v416 = vadd.f32 0.0, %v415
    %v417 = vpop.f32.mrb[0].mxu0
    %v418 = vadd.f32 0.0, %v417
    %419 = vmatprep.mubr.bf16.mxu0 %v333
    %420 = vmatmul.mubr.bf16.gmra.mrb[0].mxu0 %v199
    %v421 = vpop.f32.mrb[0].mxu0
    %v422 = vadd.f32 0.0, %v421
    %v423 = vpop.f32.mrb[0].mxu0
    %v424 = vadd.f32 0.0, %v423
    %v425 = vpop.f32.mrb[0].mxu0
    %v426 = vadd.f32 0.0, %v425
    %v427 = vpop.f32.mrb[0].mxu0
    %v428 = vadd.f32 0.0, %v427
    %429 = vmatprep.mubr.bf16.mxu0 %v336
    %430 = vmatmul.mubr.bf16.gmra.mrb[0].mxu0 %v201
    %v431 = vpop.f32.mrb[0].mxu0
    %v432 = vadd.f32 0.0, %v431
    %v433 = vpop.f32.mrb[0].mxu0
    %v434 = vadd.f32 0.0, %v433
    %v435 = vpop.f32.mrb[0].mxu0
    %v436 = vadd.f32 0.0, %v435
    %v437 = vpop.f32.mrb[0].mxu0
    %v438 = vadd.f32 0.0, %v437
    %439 = vmatprep.mubr.bf16.mxu0 %v339
    %440 = vmatmul.mubr.bf16.gmra.mrb[0].mxu0 %v203
    %v441 = vpop.f32.mrb[0].mxu0
    %v442 = vadd.f32 0.0, %v441
    %v443 = vpop.f32.mrb[0].mxu0
    %v444 = vadd.f32 0.0, %v443
    %v445 = vpop.f32.mrb[0].mxu0
    %v446 = vadd.f32 0.0, %v445
    %v447 = vpop.f32.mrb[0].mxu0
    %v448 = vadd.f32 0.0, %v447
    %449 = vmatprep.mubr.bf16.mxu0 %v342
    %450 = vmatmul.mubr.bf16.gmra.mrb[0].mxu0 %v205
    %v451 = vpop.f32.mrb[0].mxu0
    %v452 = vadd.f32 0.0, %v451
    %v453 = vpop.f32.mrb[0].mxu0
    %v454 = vadd.f32 0.0, %v453
    %v455 = vpop.f32.mrb[0].mxu0
    %v456 = vadd.f32 0.0, %v455
    %v457 = vpop.f32.mrb[0].mxu0
    %v458 = vadd.f32 0.0, %v457
    %459 = vmatprep.mubr.bf16.mxu0 %v345
    %460 = vmatmul.mubr.bf16.gmra.mrb[0].mxu0 %v207
    %v461 = vpop.f32.mrb[0].mxu0
    %v462 = vadd.f32 0.0, %v461
    %v463 = vpop.f32.mrb[0].mxu0
    %v464 = vadd.f32 0.0, %v463
    %v465 = vpop.f32.mrb[0].mxu0
    %v466 = vadd.f32 0.0, %v465
    %v467 = vpop.f32.mrb[0].mxu0
    %v468 = vadd.f32 0.0, %v467
    %469 = vdwg.mxu0
    %v470 = vmax.f32 %v392, 0.0
    %v471 = vmax.f32 %v394, 0.0
    %v472 = vmax.f32 %v396, 0.0
    %v473 = vmax.f32 %v398, 0.0
    %v474 = vmax.f32 %v402, 0.0
    %v475 = vmax.f32 %v404, 0.0
    %v476 = vmax.f32 %v406, 0.0
    %v477 = vmax.f32 %v408, 0.0
    %v478 = vmax.f32 %v412, 0.0
    %v479 = vmax.f32 %v414, 0.0
    %v480 = vmax.f32 %v416, 0.0
    %v481 = vmax.f32 %v418, 0.0
    %v482 = vmax.f32 %v422, 0.0
    %v483 = vmax.f32 %v424, 0.0
    %v484 = vmax.f32 %v426, 0.0
    %v485 = vmax.f32 %v428, 0.0
    %v486 = vmax.f32 %v432, 0.0
    %v487 = vmax.f32 %v434, 0.0
    %v488 = vmax.f32 %v436, 0.0
    %v489 = vmax.f32 %v438, 0.0
    %v490 = vmax.f32 %v442, 0.0
    %v491 = vmax.f32 %v444, 0.0
    %v492 = vmax.f32 %v446, 0.0
    %v493 = vmax.f32 %v448, 0.0
    %v494 = vmax.f32 %v452, 0.0
    %v495 = vmax.f32 %v454, 0.0
    %v496 = vmax.f32 %v456, 0.0
    %v497 = vmax.f32 %v458, 0.0
    %v498 = vmax.f32 %v462, 0.0
    %v499 = vmax.f32 %v464, 0.0
    %v500 = vmax.f32 %v466, 0.0
    %v501 = vmax.f32 %v468, 0.0
    %v502 = vpack.c.bf16 %v472, %v470
    %v503 = vpack.c.bf16 %v473, %v471
    %v504 = vpack.c.bf16 %v476, %v474
    %v505 = vpack.c.bf16 %v477, %v475
    %v506 = vpack.c.bf16 %v480, %v478
    %v507 = vpack.c.bf16 %v481, %v479
    %v508 = vpack.c.bf16 %v484, %v482
    %v509 = vpack.c.bf16 %v485, %v483
    %v510 = vpack.c.bf16 %v488, %v486
    %v511 = vpack.c.bf16 %v489, %v487
    %v512 = vpack.c.bf16 %v492, %v490
    %v513 = vpack.c.bf16 %v493, %v491
    %v514 = vpack.c.bf16 %v496, %v494
    %v515 = vpack.c.bf16 %v497, %v495
    %v516 = vpack.c.bf16 %v500, %v498
    %v517 = vpack.c.bf16 %v501, %v499
    %v518 = vld [vmem:[#allocation10] sm:$0xf]
    %v519 = vld [vmem:[#allocation10 + $0x4] sm:$0xf]
    %v520 = vld [vmem:[#allocation10 + $0x8] sm:$0xf]
    %v521 = vld [vmem:[#allocation10 + $0xc] sm:$0xf]
    %v522 = vld [vmem:[#allocation10 + $0x10] sm:$0xf]
    %v523 = vld [vmem:[#allocation10 + $0x14] sm:$0xf]
    %v524 = vld [vmem:[#allocation10 + $0x18] sm:$0xf]
    %v525 = vld [vmem:[#allocation10 + $0x1c] sm:$0xf]
    %v526 = vld [vmem:[#allocation10 + $0x20] sm:$0xf]
    %v527 = vld [vmem:[#allocation10 + $0x24] sm:$0xf]
    %v528 = vld [vmem:[#allocation10 + $0x28] sm:$0xf]
    %v529 = vld [vmem:[#allocation10 + $0x2c] sm:$0xf]
    %v530 = vld [vmem:[#allocation10 + $0x30] sm:$0xf]
    %v531 = vld [vmem:[#allocation10 + $0x34] sm:$0xf]
    %v532 = vld [vmem:[#allocation10 + $0x38] sm:$0xf]
    %v533 = vld [vmem:[#allocation10 + $0x3c] sm:$0xf]
    %v534 = vld [vmem:[#allocation10 + $0x40] sm:$0xf]
    %v535 = vld [vmem:[#allocation10 + $0x44] sm:$0xf]
    %v536 = vld [vmem:[#allocation10 + $0x48] sm:$0xf]
    %v537 = vld [vmem:[#allocation10 + $0x4c] sm:$0xf]
    %v538 = vld [vmem:[#allocation10 + $0x50] sm:$0xf]
    %v539 = vld [vmem:[#allocation10 + $0x54] sm:$0xf]
    %v540 = vld [vmem:[#allocation10 + $0x58] sm:$0xf]
    %v541 = vld [vmem:[#allocation10 + $0x5c] sm:$0xf]
    %v542 = vld [vmem:[#allocation10 + $0x60] sm:$0xf]
    %v543 = vld [vmem:[#allocation10 + $0x64] sm:$0xf]
    %v544 = vld [vmem:[#allocation10 + $0x68] sm:$0xf]
    %v545 = vld [vmem:[#allocation10 + $0x6c] sm:$0xf]
    %v546 = vld [vmem:[#allocation10 + $0x70] sm:$0xf]
    %v547 = vld [vmem:[#allocation10 + $0x74] sm:$0xf]
    %v548 = vld [vmem:[#allocation10 + $0x78] sm:$0xf]
    %v549 = vld [vmem:[#allocation10 + $0x7c] sm:$0xf]
    %v582 = vunpack.c.l.b16 %v518
    %v583 = vunpack.c.l.b16 %v519
    %v584 = vunpack.c.l.b16 %v520
    %v585 = vunpack.c.l.b16 %v521
    %v586 = vunpack.c.l.b16 %v522
    %v587 = vunpack.c.l.b16 %v523
    %v588 = vunpack.c.l.b16 %v524
    %v589 = vunpack.c.l.b16 %v525
    %v590 = vunpack.c.l.b16 %v526
    %v591 = vunpack.c.l.b16 %v527
    %v592 = vunpack.c.l.b16 %v528
    %v593 = vunpack.c.l.b16 %v529
    %v594 = vunpack.c.l.b16 %v530
    %v595 = vunpack.c.l.b16 %v531
    %v596 = vunpack.c.l.b16 %v532
    %v597 = vunpack.c.l.b16 %v533
    %v598 = vunpack.c.l.b16 %v534
    %v599 = vunpack.c.l.b16 %v535
    %v600 = vunpack.c.l.b16 %v536
    %v601 = vunpack.c.l.b16 %v537
    %v602 = vunpack.c.l.b16 %v538
    %v603 = vunpack.c.l.b16 %v539
    %v604 = vunpack.c.l.b16 %v540
    %v605 = vunpack.c.l.b16 %v541
    %v606 = vunpack.c.l.b16 %v542
    %v607 = vunpack.c.l.b16 %v543
    %v608 = vunpack.c.l.b16 %v544
    %v609 = vunpack.c.l.b16 %v545
    %v610 = vunpack.c.l.b16 %v546
    %v611 = vunpack.c.l.b16 %v547
    %v612 = vunpack.c.l.b16 %v548
    %v613 = vunpack.c.l.b16 %v549
    %v614 = vpack.c.b16 %v583, %v582
    %v615 = vpack.c.b16 %v585, %v584
    %v616 = vpack.c.b16 %v587, %v586
    %v617 = vpack.c.b16 %v589, %v588
    %v618 = vpack.c.b16 %v591, %v590
    %v619 = vpack.c.b16 %v593, %v592
    %v620 = vpack.c.b16 %v595, %v594
    %v621 = vpack.c.b16 %v597, %v596
    %v622 = vpack.c.b16 %v599, %v598
    %v623 = vpack.c.b16 %v601, %v600
    %v624 = vpack.c.b16 %v603, %v602
    %v625 = vpack.c.b16 %v605, %v604
    %v626 = vpack.c.b16 %v607, %v606
    %v627 = vpack.c.b16 %v609, %v608
    %v628 = vpack.c.b16 %v611, %v610
    %v629 = vpack.c.b16 %v613, %v612
    %646 = vmatprep.subr.bf16.mxu0 0
    %647 = vmatpush1.bf16.msra.mxu0 %v614
    %648 = vmatprep.subr.bf16.mxu0 0
    %649 = vmatpush1.bf16.msra.mxu0 %v615
    %650 = vmatprep.subr.bf16.mxu0 0
    %651 = vmatpush1.bf16.msra.mxu0 %v616
    %652 = vmatprep.subr.bf16.mxu0 0
    %653 = vmatpush1.bf16.msra.mxu0 %v617
    %654 = vmatprep.subr.bf16.mxu0 0
    %655 = vmatpush1.bf16.msra.mxu0 %v618
    %656 = vmatprep.subr.bf16.mxu0 0
    %657 = vmatpush1.bf16.msra.mxu0 %v619
    %658 = vmatprep.subr.bf16.mxu0 0
    %659 = vmatpush1.bf16.msra.mxu0 %v620
    %660 = vmatprep.subr.bf16.mxu0 0
    %661 = vmatpush1.bf16.msra.mxu0 %v621
    %662 = vmatprep.subr.bf16.mxu0 0
    %663 = vmatpush1.bf16.msra.mxu0 %v622
    %664 = vmatprep.subr.bf16.mxu0 0
    %665 = vmatpush1.bf16.msra.mxu0 %v623
    %666 = vmatprep.subr.bf16.mxu0 0
    %667 = vmatpush1.bf16.msra.mxu0 %v624
    %668 = vmatprep.subr.bf16.mxu0 0
    %669 = vmatpush1.bf16.msra.mxu0 %v625
    %670 = vmatprep.subr.bf16.mxu0 0
    %671 = vmatpush1.bf16.msra.mxu0 %v626
    %672 = vmatprep.subr.bf16.mxu0 0
    %673 = vmatpush1.bf16.msra.mxu0 %v627
    %674 = vmatprep.subr.bf16.mxu0 0
    %675 = vmatpush1.bf16.msra.mxu0 %v628
    %676 = vmatprep.subr.bf16.mxu0 0
    %677 = vmatpush1.bf16.msra.mxu0 %v629
    %678 = vmatprep.mubr.bf16.mxu0 %v503
    %679 = vmatmul.mubr.bf16.gmra.mrb[0].mxu0 %v502
    %v680 = vpop.f32.mrb[0].mxu0
    %v681 = vadd.f32 0.0, %v680
    %v682 = vpop.f32.mrb[0].mxu0
    %v683 = vpop.f32.mrb[0].mxu0
    %v684 = vadd.f32 0.0, %v683
    %v685 = vpop.f32.mrb[0].mxu0
    %686 = vmatprep.mubr.bf16.mxu0 %v505
    %687 = vmatmul.mubr.bf16.gmra.mrb[0].mxu0 %v504
    %v688 = vpop.f32.mrb[0].mxu0
    %v689 = vadd.f32 0.0, %v688
    %v690 = vpop.f32.mrb[0].mxu0
    %v691 = vpop.f32.mrb[0].mxu0
    %v692 = vadd.f32 0.0, %v691
    %v693 = vpop.f32.mrb[0].mxu0
    %694 = vmatprep.mubr.bf16.mxu0 %v507
    %695 = vmatmul.mubr.bf16.gmra.mrb[0].mxu0 %v506
    %v696 = vpop.f32.mrb[0].mxu0
    %v697 = vadd.f32 0.0, %v696
    %v698 = vpop.f32.mrb[0].mxu0
    %v699 = vpop.f32.mrb[0].mxu0
    %v700 = vadd.f32 0.0, %v699
    %v701 = vpop.f32.mrb[0].mxu0
    %702 = vmatprep.mubr.bf16.mxu0 %v509
    %703 = vmatmul.mubr.bf16.gmra.mrb[0].mxu0 %v508
    %v704 = vpop.f32.mrb[0].mxu0
    %v705 = vadd.f32 0.0, %v704
    %v706 = vpop.f32.mrb[0].mxu0
    %v707 = vpop.f32.mrb[0].mxu0
    %v708 = vadd.f32 0.0, %v707
    %v709 = vpop.f32.mrb[0].mxu0
    %710 = vmatprep.mubr.bf16.mxu0 %v511
    %711 = vmatmul.mubr.bf16.gmra.mrb[0].mxu0 %v510
    %v712 = vpop.f32.mrb[0].mxu0
    %v713 = vadd.f32 0.0, %v712
    %v714 = vpop.f32.mrb[0].mxu0
    %v715 = vpop.f32.mrb[0].mxu0
    %v716 = vadd.f32 0.0, %v715
    %v717 = vpop.f32.mrb[0].mxu0
    %718 = vmatprep.mubr.bf16.mxu0 %v513
    %719 = vmatmul.mubr.bf16.gmra.mrb[0].mxu0 %v512
    %v720 = vpop.f32.mrb[0].mxu0
    %v721 = vadd.f32 0.0, %v720
    %v722 = vpop.f32.mrb[0].mxu0
    %v723 = vpop.f32.mrb[0].mxu0
    %v724 = vadd.f32 0.0, %v723
    %v725 = vpop.f32.mrb[0].mxu0
    %726 = vmatprep.mubr.bf16.mxu0 %v515
    %727 = vmatmul.mubr.bf16.gmra.mrb[0].mxu0 %v514
    %v728 = vpop.f32.mrb[0].mxu0
    %v729 = vadd.f32 0.0, %v728
    %v730 = vpop.f32.mrb[0].mxu0
    %v731 = vpop.f32.mrb[0].mxu0
    %v732 = vadd.f32 0.0, %v731
    %v733 = vpop.f32.mrb[0].mxu0
    %734 = vmatprep.mubr.bf16.mxu0 %v517
    %735 = vmatmul.mubr.bf16.gmra.mrb[0].mxu0 %v516
    %v736 = vpop.f32.mrb[0].mxu0
    %v737 = vadd.f32 0.0, %v736
    %v738 = vpop.f32.mrb[0].mxu0
    %v739 = vpop.f32.mrb[0].mxu0
    %v740 = vadd.f32 0.0, %v739
    %v741 = vpop.f32.mrb[0].mxu0
    %742 = vdwg.mxu0
    %v743 = vadd.f32 %v681, %v684
    %v744 = vrot.slane %v743, 4
    %v745 = vadd.f32 %v743, %v744
    %v746 = vrot.slane %v745, 2
    %v747 = vadd.f32 %v745, %v746
    %v748 = vrot.slane %v747, 1
    %v749 = vadd.f32 %v747, %v748
    %v750 = vadd.f32 %v689, %v692
    %v751 = vrot.slane %v750, 4
    %v752 = vadd.f32 %v750, %v751
    %v753 = vrot.slane %v752, 2
    %v754 = vadd.f32 %v752, %v753
    %v755 = vrot.slane %v754, 1
    %v756 = vadd.f32 %v754, %v755
    %v757 = vadd.f32 %v697, %v700
    %v758 = vrot.slane %v757, 4
    %v759 = vadd.f32 %v757, %v758
    %v760 = vrot.slane %v759, 2
    %v761 = vadd.f32 %v759, %v760
    %v762 = vrot.slane %v761, 1
    %v763 = vadd.f32 %v761, %v762
    %v764 = vadd.f32 %v705, %v708
    %v765 = vrot.slane %v764, 4
    %v766 = vadd.f32 %v764, %v765
    %v767 = vrot.slane %v766, 2
    %v768 = vadd.f32 %v766, %v767
    %v769 = vrot.slane %v768, 1
    %v770 = vadd.f32 %v768, %v769
    %v771 = vadd.f32 %v713, %v716
    %v772 = vrot.slane %v771, 4
    %v773 = vadd.f32 %v771, %v772
    %v774 = vrot.slane %v773, 2
    %v775 = vadd.f32 %v773, %v774
    %v776 = vrot.slane %v775, 1
    %v777 = vadd.f32 %v775, %v776
    %v778 = vadd.f32 %v721, %v724
    %v779 = vrot.slane %v778, 4
    %v780 = vadd.f32 %v778, %v779
    %v781 = vrot.slane %v780, 2
    %v782 = vadd.f32 %v780, %v781
    %v783 = vrot.slane %v782, 1
    %v784 = vadd.f32 %v782, %v783
    %v785 = vadd.f32 %v729, %v732
    %v786 = vrot.slane %v785, 4
    %v787 = vadd.f32 %v785, %v786
    %v788 = vrot.slane %v787, 2
    %v789 = vadd.f32 %v787, %v788
    %v790 = vrot.slane %v789, 1
    %v791 = vadd.f32 %v789, %v790
    %v792 = vadd.f32 %v737, %v740
    %v793 = vrot.slane %v792, 4
    %v794 = vadd.f32 %v792, %v793
    %v795 = vrot.slane %v794, 2
    %v796 = vadd.f32 %v794, %v795
    %v797 = vrot.slane %v796, 1
    %v798 = vadd.f32 %v796, %v797
    %v799 = vld [vmem:[#allocation5] sm:$0xff]
    %v800 = vld [vmem:[#allocation8] sm:$0xff]
    %v801 = vld [vmem:[#allocation8 + $0x8] sm:$0xff]
    %v802 = vld [vmem:[#allocation8 + $0x10] sm:$0xff]
    %v803 = vld [vmem:[#allocation8 + $0x18] sm:$0xff]
    %v804 = vld [vmem:[#allocation8 + $0x20] sm:$0xff]
    %v805 = vld [vmem:[%s6] sm:$0x1]
    %v806 = vlaneseq
    %v807 = vshrl.u32 %v806, 7
    %v808 = vsub.s32 0, %v807
    %v809 = vrot.slane %v805, %v808
    %vm810 = vcmask 326656
    %v812 = vsel %vm810, %v799, 0
    %814 = vmatprep.subr.mxu0 0.0
    %815 = vmatpush1.msra.mxu0 %v800
    %816 = vmatprep.subr.mxu0 0.0
    %817 = vmatpush1.msra.mxu0 %v801
    %818 = vmatprep.subr.mxu0 0.0
    %819 = vmatpush1.msra.mxu0 %v802
    %820 = vmatprep.subr.mxu0 0.0
    %821 = vmatpush1.msra.mxu0 %v803
    %822 = vmatprep.subr.mxu0 0.0
    %823 = vmatpush1.msra.mxu0 %v804
    %824 = vmatprep.subr.mxu0 0.0
    %825 = vmatpush1.msra.mxu0 0.0
    %826 = vmatprep.subr.mxu0 0.0
    %827 = vmatpush1.msra.mxu0 0.0
    %828 = vmatprep.subr.mxu0 0.0
    %829 = vmatpush1.msra.mxu0 0.0
    %830 = vmatprep.subr.mxu0 0.0
    %831 = vmatpush1.msra.mxu0 0.0
    %832 = vmatprep.subr.mxu0 0.0
    %833 = vmatpush1.msra.mxu0 0.0
    %834 = vmatprep.subr.mxu0 0.0
    %835 = vmatpush1.msra.mxu0 0.0
    %836 = vmatprep.subr.mxu0 0.0
    %837 = vmatpush1.msra.mxu0 0.0
    %838 = vmatprep.subr.mxu0 0.0
    %839 = vmatpush1.msra.mxu0 0.0
    %840 = vmatprep.subr.mxu0 0.0
    %841 = vmatpush1.msra.mxu0 0.0
    %842 = vmatprep.subr.mxu0 0.0
    %843 = vmatpush1.msra.mxu0 0.0
    %844 = vmatprep.subr.mxu0 0.0
    %845 = vmatpush1.msra.mxu0 0.0
    %846 = vmatprep.subr.mxu0 0.0
    %847 = vmatpush1.msra.mxu0 0.0
    %848 = vmatprep.subr.mxu0 0.0
    %849 = vmatpush1.msra.mxu0 0.0
    %850 = vmatprep.subr.mxu0 0.0
    %851 = vmatpush1.msra.mxu0 0.0
    %852 = vmatprep.subr.mxu0 0.0
    %853 = vmatpush1.msra.mxu0 0.0
    %854 = vmatprep.subr.mxu0 0.0
    %855 = vmatpush1.msra.mxu0 0.0
    %856 = vmatprep.subr.mxu0 0.0
    %857 = vmatpush1.msra.mxu0 0.0
    %858 = vmatprep.subr.mxu0 0.0
    %859 = vmatpush1.msra.mxu0 0.0
    %860 = vmatprep.subr.mxu0 0.0
    %861 = vmatpush1.msra.mxu0 0.0
    %862 = vmatprep.subr.mxu0 0.0
    %863 = vmatpush1.msra.mxu0 0.0
    %864 = vmatprep.subr.mxu0 0.0
    %865 = vmatpush1.msra.mxu0 0.0
    %866 = vmatprep.subr.mxu0 0.0
    %867 = vmatpush1.msra.mxu0 0.0
    %868 = vmatprep.subr.mxu0 0.0
    %869 = vmatpush1.msra.mxu0 0.0
    %870 = vmatprep.subr.mxu0 0.0
    %871 = vmatpush1.msra.mxu0 0.0
    %872 = vmatprep.subr.mxu0 0.0
    %873 = vmatpush1.msra.mxu0 0.0
    %874 = vmatprep.subr.mxu0 0.0
    %875 = vmatpush1.msra.mxu0 0.0
    %876 = vmatprep.subr.mxu0 0.0
    %877 = vmatpush1.msra.mxu0 0.0
    %878 = vmatprep.mubr.f32.mxu0 0.0
    %879 = vmatmul.mubr.f32.gmra.mrb[0].mxu0 %v812
    %v880 = vpop.f32.mrb[0].mxu0
    %v881 = vadd.f32 %v809, %v880
    %v882 = vpop.f32.mrb[0].mxu0
    %883 = vdwg.mxu0
    %v884 = vmax.f32 %v881, 0.0
    %v885 = vld [vmem:[#allocation11] sm:$0xff]
    %v886 = vld [vmem:[#allocation11 + $0x8] sm:$0xff]
    %v887 = vld [vmem:[#allocation11 + $0x10] sm:$0xff]
    %v888 = vld [vmem:[#allocation11 + $0x18] sm:$0xff]
    %v889 = vld [vmem:[#allocation11 + $0x20] sm:$0xff]
    %v890 = vld [vmem:[#allocation11 + $0x28] sm:$0xff]
    %v891 = vld [vmem:[#allocation11 + $0x30] sm:$0xff]
    %v892 = vld [vmem:[#allocation11 + $0x38] sm:$0xff]
    %vm893 = vcmask 523264
    %v895 = vsel %vm893, %v884, 0
    %897 = vmatprep.subr.mxu0 0.0
    %898 = vmatpush1.msra.mxu0 %v885
    %899 = vmatprep.subr.mxu0 0.0
    %900 = vmatpush1.msra.mxu0 %v886
    %901 = vmatprep.subr.mxu0 0.0
    %902 = vmatpush1.msra.mxu0 %v887
    %903 = vmatprep.subr.mxu0 0.0
    %904 = vmatpush1.msra.mxu0 %v888
    %905 = vmatprep.subr.mxu0 0.0
    %906 = vmatpush1.msra.mxu0 %v889
    %907 = vmatprep.subr.mxu0 0.0
    %908 = vmatpush1.msra.mxu0 %v890
    %909 = vmatprep.subr.mxu0 0.0
    %910 = vmatpush1.msra.mxu0 %v891
    %911 = vmatprep.subr.mxu0 0.0
    %912 = vmatpush1.msra.mxu0 %v892
    %913 = vmatprep.subr.mxu0 0.0
    %914 = vmatpush1.msra.mxu0 0.0
    %915 = vmatprep.subr.mxu0 0.0
    %916 = vmatpush1.msra.mxu0 0.0
    %917 = vmatprep.subr.mxu0 0.0
    %918 = vmatpush1.msra.mxu0 0.0
    %919 = vmatprep.subr.mxu0 0.0
    %920 = vmatpush1.msra.mxu0 0.0
    %921 = vmatprep.subr.mxu0 0.0
    %922 = vmatpush1.msra.mxu0 0.0
    %923 = vmatprep.subr.mxu0 0.0
    %924 = vmatpush1.msra.mxu0 0.0
    %925 = vmatprep.subr.mxu0 0.0
    %926 = vmatpush1.msra.mxu0 0.0
    %927 = vmatprep.subr.mxu0 0.0
    %928 = vmatpush1.msra.mxu0 0.0
    %929 = vmatprep.subr.mxu0 0.0
    %930 = vmatpush1.msra.mxu0 0.0
    %931 = vmatprep.subr.mxu0 0.0
    %932 = vmatpush1.msra.mxu0 0.0
    %933 = vmatprep.subr.mxu0 0.0
    %934 = vmatpush1.msra.mxu0 0.0
    %935 = vmatprep.subr.mxu0 0.0
    %936 = vmatpush1.msra.mxu0 0.0
    %937 = vmatprep.subr.mxu0 0.0
    %938 = vmatpush1.msra.mxu0 0.0
    %939 = vmatprep.subr.mxu0 0.0
    %940 = vmatpush1.msra.mxu0 0.0
    %941 = vmatprep.subr.mxu0 0.0
    %942 = vmatpush1.msra.mxu0 0.0
    %943 = vmatprep.subr.mxu0 0.0
    %944 = vmatpush1.msra.mxu0 0.0
    %945 = vmatprep.subr.mxu0 0.0
    %946 = vmatpush1.msra.mxu0 0.0
    %947 = vmatprep.subr.mxu0 0.0
    %948 = vmatpush1.msra.mxu0 0.0
    %949 = vmatprep.subr.mxu0 0.0
    %950 = vmatpush1.msra.mxu0 0.0
    %951 = vmatprep.subr.mxu0 0.0
    %952 = vmatpush1.msra.mxu0 0.0
    %953 = vmatprep.subr.mxu0 0.0
    %954 = vmatpush1.msra.mxu0 0.0
    %955 = vmatprep.subr.mxu0 0.0
    %956 = vmatpush1.msra.mxu0 0.0
    %957 = vmatprep.subr.mxu0 0.0
    %958 = vmatpush1.msra.mxu0 0.0
    %959 = vmatprep.subr.mxu0 0.0
    %960 = vmatpush1.msra.mxu0 0.0
    %961 = vmatprep.mubr.f32.mxu0 0.0
    %962 = vmatmul.mubr.f32.gmra.mrb[0].mxu0 %v895
    %v963 = vpop.f32.mrb[0].mxu0
    %v964 = vadd.f32 0.0, %v963
    %v965 = vpop.f32.mrb[0].mxu0
    %966 = vdwg.mxu0
    %v968 = vrot.slane %v964, 1
    %v969 = vrot.slane %v964, 2
    %v970 = vrot.slane %v964, 3
    %v971 = vrot.slane %v964, 4
    %v972 = vrot.slane %v964, 5
    %v973 = vrot.slane %v964, 6
    %v974 = vrot.slane %v964, 7
    %v983 = vadd.f32 %v749, %v964
    %v984 = vadd.f32 %v756, %v968
    %v985 = vadd.f32 %v763, %v969
    %v986 = vadd.f32 %v770, %v970
    %v987 = vadd.f32 %v777, %v971
    %v988 = vadd.f32 %v784, %v972
    %v989 = vadd.f32 %v791, %v973
    %v990 = vadd.f32 %v798, %v974
    %v991 = vld [vmem:[%s6 + $0x1] sm:$0x1]
    %v992 = vlaneseq
    %v993 = vshrl.u32 %v992, 7
    %v994 = vsub.s32 0, %v993
    %v995 = vrot.slane %v991, %v994
    %v996 = vadd.f32 %v983, %v995
    %v997 = vadd.f32 %v984, %v995
    %v998 = vadd.f32 %v985, %v995
    %v999 = vadd.f32 %v986, %v995
    %v1000 = vadd.f32 %v987, %v995
    %v1001 = vadd.f32 %v988, %v995
    %v1002 = vadd.f32 %v989, %v995
    %v1003 = vadd.f32 %v990, %v995
    %v1012 = vrot.slane %v997, 7
    %vm1013 = vcmask 1041409
    %v1014 = vsel %vm1013, %v1012, %v996
    %v1015 = vrot.slane %v998, 6
    %vm1016 = vcmask 1042434
    %v1017 = vsel %vm1016, %v1015, %v1014
    %v1018 = vrot.slane %v999, 5
    %vm1019 = vcmask 1043459
    %v1020 = vsel %vm1019, %v1018, %v1017
    %v1021 = vrot.slane %v1000, 4
    %vm1022 = vcmask 1044484
    %v1023 = vsel %vm1022, %v1021, %v1020
    %v1024 = vrot.slane %v1001, 3
    %vm1025 = vcmask 1045509
    %v1026 = vsel %vm1025, %v1024, %v1023
    %v1027 = vrot.slane %v1002, 2
    %vm1028 = vcmask 1046534
    %v1029 = vsel %vm1028, %v1027, %v1026
    %v1030 = vrot.slane %v1003, 1
    %vm1031 = vcmask 1047559
    %v1032 = vsel %vm1031, %v1030, %v1029
    %1034 = vmax.xlane.f32.xlu0 %v1032
    %v1035 = vpop.xlane.xlu0 %1034
    %v1037 = vrot.slane %v1035, 1
    %v1038 = vrot.slane %v1035, 2
    %v1039 = vrot.slane %v1035, 3
    %v1040 = vrot.slane %v1035, 4
    %v1041 = vrot.slane %v1035, 5
    %v1042 = vrot.slane %v1035, 6
    %v1043 = vrot.slane %v1035, 7
    %v1052 = vsub.f32 %v996, %v1035
    %v1053 = vsub.f32 %v997, %v1037
    %v1054 = vsub.f32 %v998, %v1038
    %v1055 = vsub.f32 %v999, %v1039
    %v1056 = vsub.f32 %v1000, %v1040
    %v1057 = vsub.f32 %v1001, %v1041
    %v1058 = vsub.f32 %v1002, %v1042
    %v1059 = vsub.f32 %v1003, %v1043
    %v1060 = vmul.f32 %v1052, 1.442695
    %v1061 = vpow.pop %v1060
    %v1062 = vmul.f32 %v1053, 1.442695
    %v1063 = vpow.pop %v1062
    %v1064 = vmul.f32 %v1054, 1.442695
    %v1065 = vpow.pop %v1064
    %v1066 = vmul.f32 %v1055, 1.442695
    %v1067 = vpow.pop %v1066
    %v1068 = vmul.f32 %v1056, 1.442695
    %v1069 = vpow.pop %v1068
    %v1070 = vmul.f32 %v1057, 1.442695
    %v1071 = vpow.pop %v1070
    %v1072 = vmul.f32 %v1058, 1.442695
    %v1073 = vpow.pop %v1072
    %v1074 = vmul.f32 %v1059, 1.442695
    %v1075 = vpow.pop %v1074
    %v1084 = vrot.slane %v1063, 7
    %v1085 = vsel %vm1013, %v1084, %v1061
    %v1086 = vrot.slane %v1065, 6
    %v1087 = vsel %vm1016, %v1086, %v1085
    %v1088 = vrot.slane %v1067, 5
    %v1089 = vsel %vm1019, %v1088, %v1087
    %v1090 = vrot.slane %v1069, 4
    %v1091 = vsel %vm1022, %v1090, %v1089
    %v1092 = vrot.slane %v1071, 3
    %v1093 = vsel %vm1025, %v1092, %v1091
    %v1094 = vrot.slane %v1073, 2
    %v1095 = vsel %vm1028, %v1094, %v1093
    %v1096 = vrot.slane %v1075, 1
    %v1097 = vsel %vm1031, %v1096, %v1095
    %1099 = vadd.xlane.f32.xlu0 %v1097
    %v1100 = vpop.xlane.xlu0 %1099
    %v1102 = vrot.slane %v1100, 1
    %v1103 = vrot.slane %v1100, 2
    %v1104 = vrot.slane %v1100, 3
    %v1105 = vrot.slane %v1100, 4
    %v1106 = vrot.slane %v1100, 5
    %v1107 = vrot.slane %v1100, 6
    %v1108 = vrot.slane %v1100, 7
    %v1117 = vrcp.pop %v1100
    %v1118 = vmul.f32 %v1061, %v1117
    %v1119 = vrcp.pop %v1102
    %v1120 = vmul.f32 %v1063, %v1119
    %v1121 = vrcp.pop %v1103
    %v1122 = vmul.f32 %v1065, %v1121
    %v1123 = vrcp.pop %v1104
    %v1124 = vmul.f32 %v1067, %v1123
    %v1125 = vrcp.pop %v1105
    %v1126 = vmul.f32 %v1069, %v1125
    %v1127 = vrcp.pop %v1106
    %v1128 = vmul.f32 %v1071, %v1127
    %v1129 = vrcp.pop %v1107
    %v1130 = vmul.f32 %v1073, %v1129
    %v1131 = vrcp.pop %v1108
    %v1132 = vmul.f32 %v1075, %v1131
    %v1141 = vrot.slane %v1120, 7
    %v1142 = vsel %vm1013, %v1141, %v1118
    %v1143 = vrot.slane %v1122, 6
    %v1144 = vsel %vm1016, %v1143, %v1142
    %v1145 = vrot.slane %v1124, 5
    %v1146 = vsel %vm1019, %v1145, %v1144
    %v1147 = vrot.slane %v1126, 4
    %v1148 = vsel %vm1022, %v1147, %v1146
    %v1149 = vrot.slane %v1128, 3
    %v1150 = vsel %vm1025, %v1149, %v1148
    %v1151 = vrot.slane %v1130, 2
    %v1152 = vsel %vm1028, %v1151, %v1150
    %v1153 = vrot.slane %v1132, 1
    %v1154 = vsel %vm1031, %v1153, %v1152
    %1156 = vst [vmem:[#allocation13] sm:$0xff] %v1154
    // Predicated region
    $region54: #{tpu_custom_call.1} parent=1 // pred_check
      _
    $region55: #{tpu_custom_call.1} parent=1 // pred_check_branch
      %1158 = sbr.rel (0) target = $region57
    $region56: #{tpu_custom_call.1} parent=1 // pred_region
      %s1160 = ssub.s32 128, 128
      %1161 = vsyncadd [#allocation4], %s1160
      %s1163 = sshll.u32 [#allocation13], 4
      %s1164 = int_to_ptr.vmem [resolvable:$true] %s1163
      %1166 = dma.vmem_to_hbm [thread:$0]  %s1164, 128, %s7, [#allocation4]
    $region57: #{tpu_custom_call.1} parent=1 // pred_fallthru
      _
    // Predicated region
    $region58: #{tpu_custom_call.1} parent=1 // pred_check
      _
    $region59: #{tpu_custom_call.1} parent=1 // pred_check_branch
      %1168 = sbr.rel (0) target = $region61
    $region60: #{tpu_custom_call.1} parent=1 // pred_region
      %1169 = dma.done [#allocation4], 128
    $region61: #{tpu_custom_call.1} parent=1 // pred_fallthru
      _
    %1170 = vsyncpa [#allocation3], 1
    %1171 = vsyncpa [#allocation6], 1
    %1172 = vsyncpa [#allocation9], 1
    %1173 = vsyncpa [#allocation12], 1
    %1174 = vsyncpa [#allocation4], 1

</llo_original>
